<compile_context>
chip_gen: v5e
topology: v5e:2x2
jax: 0.10.0
libtpu: 0.0.40
codegen_flags: <defaults>
</compile_context>

<pallas_src>
import functools

import jax
import jax.numpy as jnp
from jax.experimental import pallas as pl
from jax.experimental.pallas import tpu as pltpu


# ----------------------------- Pallas kernel --------------------------------
def _seq2d_kernel(x_ref, w_ref, b_ref, o_ref, acc_ref):
    """One (tm, tn) output tile, accumulated over the K grid axis."""
    k = pl.program_id(2)

    @pl.when(k == 0)
    def _init():
        # Initialise the accumulator with the broadcast bias (saves a separate
        # VPU pass over the full tile after the matmul).
        acc_ref[...] = jnp.broadcast_to(b_ref[...], acc_ref.shape)

    acc_ref[...] += jnp.dot(x_ref[...], w_ref[...],
                            preferred_element_type=jnp.float32)

    @pl.when(k == pl.num_programs(2) - 1)
    def _store():
        o_ref[...] = acc_ref[...].astype(o_ref.dtype)


@functools.partial(jax.jit, static_argnames=("tm", "tn", "tk"))
def _seq2d_matmul(x_pad, w_pad, b_pad, tm, tn, tk):
    Mp, Kp = x_pad.shape
    _, Np = w_pad.shape
    grid = (Mp // tm, Np // tn, Kp // tk)

    cost = pl.CostEstimate(
        flops=2 * Mp * Kp * Np,
        transcendentals=0,
        bytes_accessed=(x_pad.size * x_pad.dtype.itemsize
                        + w_pad.size * w_pad.dtype.itemsize
                        + Mp * Np * 4 + Np * 4),
    )

    return pl.pallas_call(
        _seq2d_kernel,
        out_shape=jax.ShapeDtypeStruct((Mp, Np), jnp.float32),
        grid_spec=pltpu.PrefetchScalarGridSpec(
            num_scalar_prefetch=0,
            grid=grid,
            in_specs=[
                pl.BlockSpec((tm, tk), lambda i, j, k: (i, k)),   # X tile
                pl.BlockSpec((tk, tn), lambda i, j, k: (k, j)),   # W tile
                pl.BlockSpec((1, tn), lambda i, j, k: (0, j)),    # bias tile
            ],
            out_specs=pl.BlockSpec((tm, tn), lambda i, j, k: (i, j)),
            scratch_shapes=[pltpu.VMEM((tm, tn), jnp.float32)],
        ),
        compiler_params=pltpu.CompilerParams(
            dimension_semantics=("parallel", "parallel", "arbitrary"),
            vmem_limit_bytes=32 * 1024 * 1024,
        ),
        cost_estimate=cost,
    )(x_pad, w_pad, b_pad)


def _round_up(x, m):
    return ((x + m - 1) // m) * m


def sequential2d_forward(x, w_big, b_big):
    """forward_vector(X) = X @ W_big + b_big via the tiled Pallas kernel.

    Pads K/N to 128-lane multiples and M to a bf16-friendly sublane multiple,
    casts X/W to bf16 (f32 accumulate), and slices the padding off the result.
    """
    M, K = x.shape
    K2, N = w_big.shape
    assert K == K2

    # Tile choices: lane dims stay multiples of 128; bigger tiles for big dims.
    tn = 256 if N >= 512 else 128
    tk = 256 if K >= 512 else 128
    tm = 128 if M >= 128 else _round_up(M, 16)

    Mp = _round_up(M, tm)
    Kp = _round_up(K, tk)
    Np = _round_up(N, tn)

    x_bf = x.astype(jnp.bfloat16)
    w_bf = w_big.astype(jnp.bfloat16)

    x_pad = jnp.zeros((Mp, Kp), jnp.bfloat16).at[:M, :K].set(x_bf)
    w_pad = jnp.zeros((Kp, Np), jnp.bfloat16).at[:K, :N].set(w_bf)
    b_pad = jnp.zeros((1, Np), jnp.float32).at[0, :N].set(
        b_big.astype(jnp.float32))

    out = _seq2d_matmul(x_pad, w_pad, b_pad, tm, tn, tk)
    return out[:M, :N]


# --------------------------- parameter construction -------------------------
def torch_linear_init(key, in_f, out_f):
    """Deterministic init matching torch.nn.Linear: U(-1/sqrt(in), 1/sqrt(in))."""
    kw, kb = jax.random.split(key)
    bound = 1.0 / jnp.sqrt(jnp.float32(in_f))
    W = jax.random.uniform(kw, (out_f, in_f), jnp.float32, -bound, bound)
    b = jax.random.uniform(kb, (out_f,), jnp.float32, -bound, bound)
    return W, b


def build_sequential2d_params(key, in_features_list, out_features_list, block_types):
    """block_types[i][j] in {'Linear', 'Identity', None}.
    Returns (W_big, b_big, blocks) where blocks maps (i,j) -> params for the ref."""
    in_features = sum(in_features_list)
    out_features = sum(out_features_list)
    W_big = jnp.zeros((in_features, out_features), jnp.float32)
    b_big = jnp.zeros((out_features,), jnp.float32)
    blocks = {}
    for i in range(len(in_features_list)):
        for j in range(len(out_features_list)):
            bt = block_types[i][j]
            if bt is None:
                continue
            in_s = sum(in_features_list[:i])
            in_e = sum(in_features_list[:i + 1])
            out_s = sum(out_features_list[:j])
            out_e = sum(out_features_list[:j + 1])
            if bt == "Linear":
                key, sub = jax.random.split(key)
                W, b = torch_linear_init(sub, in_features_list[i], out_features_list[j])
                W_big = W_big.at[in_s:in_e, out_s:out_e].set(W.T)
                b_big = b_big.at[out_s:out_e].add(b)
                blocks[(i, j)] = ("Linear", W, b)
            elif bt == "Identity":
                assert in_features_list[i] == out_features_list[j]
                W_big = W_big.at[in_s:in_e, out_s:out_e].set(
                    jnp.eye(in_features_list[i], dtype=jnp.float32))
                blocks[(i, j)] = ("Identity",)
            else:
                raise ValueError(bt)
    return W_big, b_big, blocks


def reference_forward_vector(x, in_features_list, out_features_list, blocks):
    """Pure-JAX (f32) mirror of Sequential2D.forward_vector (per-block accumulation)."""
    out = jnp.zeros((x.shape[0], sum(out_features_list)), jnp.float32)
    for (i, j), blk in blocks.items():
        in_s = sum(in_features_list[:i])
        in_e = sum(in_features_list[:i + 1])
        out_s = sum(out_features_list[:j])
        out_e = sum(out_features_list[:j + 1])
        xi = x[:, in_s:in_e]
        if blk[0] == "Linear":
            _, W, b = blk
            tmp = xi @ W.T + b
        else:  # Identity
            tmp = xi
        out = out.at[:, out_s:out_e].add(tmp)
    return out


# ---------------------------------- main -------------------------------------
if __name__ == "__main__":
    key = jax.random.PRNGKey(0)

    # Sequential2D configuration (matches Sequential2D.from_config semantics).
    in_features_list = [16, 32, 16]     # sum = 64
    out_features_list = [16, 48]        # sum = 64
    block_types = [
        ["Identity", "Linear"],         # (0,0): Identity 16->16, (0,1): Linear 16->48
        ["Linear",   None],             # (1,0): Linear 32->16,   (1,1): None (zeros)
        [None,       "Linear"],         # (2,0): None,            (2,1): Linear 16->48
    ]

    key, kp, kx = jax.random.split(key, 3)
    W_big, b_big, blocks = build_sequential2d_params(
        kp, in_features_list, out_features_list, block_types)

    batch = 8
    x = jax.random.normal(kx, (batch, sum(in_features_list)), jnp.float32)

    # Pallas kernel forward (bf16 inputs/weights, f32 accumulate).
    y = sequential2d_forward(x, W_big, b_big)
    y = jax.block_until_ready(y)

    # Check against the per-block f32 reference (Sequential2D.forward_vector
    # semantics).  Tolerance is loosened for the bf16 input/weight cast.
    y_ref = reference_forward_vector(x, in_features_list, out_features_list, blocks)
    assert y.shape == (batch, sum(out_features_list))
    assert jnp.allclose(y, y_ref, atol=5e-2, rtol=5e-2), (
        f"max abs err {jnp.max(jnp.abs(y - y_ref))}")

    print("KERNEL_OK")
</pallas_src>

<mosaic_0001>
module attributes {stable_mosaic.version = 11 : i64} {
  func.func @_seq2d_kernel(%arg0: i32, %arg1: i32, %arg2: i32, %arg3: memref<16x128xbf16, #tpu.memory_space<vmem>>, %arg4: memref<128x128xbf16, #tpu.memory_space<vmem>>, %arg5: memref<1x128xf32, #tpu.memory_space<vmem>>, %arg6: memref<16x128xf32, #tpu.memory_space<vmem>>, %arg7: memref<16x128xf32, #tpu.memory_space<vmem>>) attributes {dimension_semantics = [#tpu.dimension_semantics<parallel>, #tpu.dimension_semantics<parallel>, #tpu.dimension_semantics<arbitrary>], iteration_bounds = array<i64: 1, 1, 1>, scalar_prefetch = 0 : i64, scratch_operands = 1 : i64, tpu.core_type = #tpu.core_type<tc>, window_params = [{transform_indices = @transform_0, window_bounds = array<i64: 16, 128>}, {transform_indices = @transform_1, window_bounds = array<i64: 128, 128>}, {transform_indices = @transform_2, window_bounds = array<i64: 1, 128>}, {transform_indices = @transform_3, window_bounds = array<i64: 16, 128>}]} {
    %c0_i32 = arith.constant 0 : i32
    %0 = arith.cmpi eq, %arg2, %c0_i32 : i32
    %1 = arith.extui %0 : i1 to i32
    %c0_i32_0 = arith.constant 0 : i32
    %2 = arith.cmpi ne, %1, %c0_i32_0 : i32
    scf.if %2 {
      %c0_10 = arith.constant 0 : index
      %c0_11 = arith.constant 0 : index
      %12 = vector.load %arg5[%c0_10, %c0_11] : memref<1x128xf32, #tpu.memory_space<vmem>>, vector<1x128xf32>
      %13 = vector.shape_cast %12 : vector<1x128xf32> to vector<1x128xf32>
      %14 = vector.broadcast %13 : vector<1x128xf32> to vector<16x128xf32>
      %c0_12 = arith.constant 0 : index
      %c0_13 = arith.constant 0 : index
      %15 = vector.load %arg7[%c0_12, %c0_13] : memref<16x128xf32, #tpu.memory_space<vmem>>, vector<16x128xf32>
      tpu.vector_store %arg7[%c0_12, %c0_13], %14 {strides = array<i32>} : memref<16x128xf32, #tpu.memory_space<vmem>>, vector<16x128xf32>,
    } else {
    }
    %c0 = arith.constant 0 : index
    %c0_1 = arith.constant 0 : index
    %3 = vector.load %arg7[%c0, %c0_1] : memref<16x128xf32, #tpu.memory_space<vmem>>, vector<16x128xf32>
    %c0_2 = arith.constant 0 : index
    %c0_3 = arith.constant 0 : index
    %4 = vector.load %arg3[%c0_2, %c0_3] : memref<16x128xbf16, #tpu.memory_space<vmem>>, vector<16x128xbf16>
    %c0_4 = arith.constant 0 : index
    %c0_5 = arith.constant 0 : index
    %5 = vector.load %arg4[%c0_4, %c0_5] : memref<128x128xbf16, #tpu.memory_space<vmem>>, vector<128x128xbf16>
    %cst = arith.constant dense<0.000000e+00> : vector<16x128xf32>
    %6 = tpu.matmul %4, %5, %cst {dimension_numbers = #tpu.dot_dimension_numbers<[1], [0], [0], [1], [0, 0, 1, 1], [], []>} : vector<16x128xbf16>, vector<128x128xbf16>, vector<16x128xf32> -> vector<16x128xf32>
    %7 = arith.addf %3, %6 : vector<16x128xf32>
    %c0_6 = arith.constant 0 : index
    %c0_7 = arith.constant 0 : index
    %8 = vector.load %arg7[%c0_6, %c0_7] : memref<16x128xf32, #tpu.memory_space<vmem>>, vector<16x128xf32>
    tpu.vector_store %arg7[%c0_6, %c0_7], %7 {strides = array<i32>} : memref<16x128xf32, #tpu.memory_space<vmem>>, vector<16x128xf32>,
    %c0_i32_8 = arith.constant 0 : i32
    %9 = arith.cmpi eq, %arg2, %c0_i32_8 : i32
    %10 = arith.extui %9 : i1 to i32
    %c0_i32_9 = arith.constant 0 : i32
    %11 = arith.cmpi ne, %10, %c0_i32_9 : i32
    scf.if %11 {
      %c0_10 = arith.constant 0 : index
      %c0_11 = arith.constant 0 : index
      %12 = vector.load %arg7[%c0_10, %c0_11] : memref<16x128xf32, #tpu.memory_space<vmem>>, vector<16x128xf32>
      %c0_12 = arith.constant 0 : index
      %c0_13 = arith.constant 0 : index
      %13 = vector.load %arg6[%c0_12, %c0_13] : memref<16x128xf32, #tpu.memory_space<vmem>>, vector<16x128xf32>
      tpu.vector_store %arg6[%c0_12, %c0_13], %12 {strides = array<i32>} : memref<16x128xf32, #tpu.memory_space<vmem>>, vector<16x128xf32>,
    } else {
    }
    return
  }
  func.func @transform_0(%arg0: i32, %arg1: i32, %arg2: i32) -> (i32, i32) {
    %c0_i32 = arith.constant 0 : i32
    return %arg0, %arg2 : i32, i32
  }
  func.func @transform_1(%arg0: i32, %arg1: i32, %arg2: i32) -> (i32, i32) {
    %c0_i32 = arith.constant 0 : i32
    return %arg2, %arg1 : i32, i32
  }
  func.func @transform_2(%arg0: i32, %arg1: i32, %arg2: i32) -> (i32, i32) {
    %c0_i32 = arith.constant 0 : i32
    %c0_i32_0 = arith.constant 0 : i32
    return %c0_i32, %arg1 : i32, i32
  }
  func.func @transform_3(%arg0: i32, %arg1: i32, %arg2: i32) -> (i32, i32) {
    %c0_i32 = arith.constant 0 : i32
    return %arg0, %arg1 : i32, i32
  }
}

</mosaic_0001>

<llo_original>
// kernel: _seq2d_matmul.1
$region0: #{_seq2d_matmul.1}
  #allocation0 [shape = 'u32[]', space=smem, size = 0x4, offset = 0x4, fixed_abs, tag = 'smem constant byte address 0x4 - core index']
  #allocation1 [shape = 'u32[72,128]{1,0:T(1,128)}', space=vmem, size = 0x9000, scoped, tag = 'internal scratch']
  #allocation2 [shape = 'f32[16,128]{1,0:T(8,128)}', space=vmem, size = 0x2000, scoped, tag = 'scratch operand']
  %s0 = inlined_call_operand.hbm [shape: bf16[16,128], index: 0, kind: input, shape index: {}]
  %s1 = inlined_call_operand.hbm [shape: bf16[128,128], index: 1, kind: input, shape index: {}]
  %s2 = inlined_call_operand.vmem [shape: f32[1,128], index: 2, kind: input, shape index: {}]
  %s3 = inlined_call_operand.hbm [shape: f32[16,128], index: 3, kind: output, shape index: {}]
  %s4 = sld [smem:[#allocation0]]
  $region38: #{_seq2d_matmul.1} parent=0
    _
  %s6 = ssub.s32 1, %s4
  %s7 = scalar_select 0, %s6, %s4
  $region1: #{_seq2d_matmul.1} parent=0
    #allocation3 [shape = 'u8[4096]{0}', space=vmem, size = 0x1000, scoped, tag = 'input window, operand 0, single buffered']
    #allocation4 [shape = 's32[1]{0}', space=sflag, size = 0x4, scoped, tag = 'scoped memory for _seq2d_matmul.1']
    #allocation5 [shape = 's32[1]{0}', space=sflag, size = 0x4, scoped, tag = 'scoped memory for _seq2d_matmul.1']
    #allocation6 [shape = 'u8[32768]{0}', space=vmem, size = 0x8000, scoped, tag = 'input window, operand 1, single buffered']
    #allocation7 [shape = 's32[1]{0}', space=sflag, size = 0x4, scoped, tag = 'scoped memory for _seq2d_matmul.1']
    #allocation8 [shape = 'u8[8192]{0}', space=vmem, size = 0x2000, scoped, tag = 'output window, operand 0, single buffered']
    %8 = vsyncpa [#allocation4], 0
    %9 = vsyncpa [#allocation7], 0
    %10 = vsyncpa [#allocation5], 0
    // Predicated region
    $region2: #{_seq2d_matmul.1} parent=1 // pred_check
      _
    $region3: #{_seq2d_matmul.1} parent=1 // pred_check_branch
      %12 = sbr.rel (0) target = $region5
    $region4: #{_seq2d_matmul.1} parent=1 // pred_region
      %14 = vsyncadd [#allocation4], 0
      %s15 = sshll.u32 %s0, 4
      %s16 = int_to_ptr.hbm [resolvable:$true] %s15
      %s17 = sshll.u32 [#allocation3], 4
      %s18 = int_to_ptr.vmem [resolvable:$true] %s17
      %23 = dma.hbm_to_vmem [thread:$0]  %s16, 128, %s18, [#allocation4], 64, 64, 4
    $region5: #{_seq2d_matmul.1} parent=1 // pred_fallthru
      _
    // Predicated region
    $region6: #{_seq2d_matmul.1} parent=1 // pred_check
      _
    $region7: #{_seq2d_matmul.1} parent=1 // pred_check_branch
      %25 = sbr.rel (0) target = $region9
    $region8: #{_seq2d_matmul.1} parent=1 // pred_region
      %27 = vsyncadd [#allocation7], 0
      %s28 = sshll.u32 %s1, 4
      %s29 = int_to_ptr.hbm [resolvable:$true] %s28
      %s30 = sshll.u32 [#allocation6], 4
      %s31 = int_to_ptr.vmem [resolvable:$true] %s30
      %36 = dma.hbm_to_vmem [thread:$0]  %s29, 1024, %s31, [#allocation7], 64, 64, 4
    $region9: #{_seq2d_matmul.1} parent=1 // pred_fallthru
      _
    // Predicated region
    $region10: #{_seq2d_matmul.1} parent=1 // pred_check
      _
    $region11: #{_seq2d_matmul.1} parent=1 // pred_check_branch
      %38 = sbr.rel (0) target = $region13
    $region12: #{_seq2d_matmul.1} parent=1 // pred_region
      _
    $region13: #{_seq2d_matmul.1} parent=1 // pred_fallthru
      _
    // Predicated region
    $region14: #{_seq2d_matmul.1} parent=1 // pred_check
      _
    $region15: #{_seq2d_matmul.1} parent=1 // pred_check_branch
      %40 = sbr.rel (0) target = $region17
    $region16: #{_seq2d_matmul.1} parent=1 // pred_region
      %42 = dma.done [#allocation4], 128
    $region17: #{_seq2d_matmul.1} parent=1 // pred_fallthru
      _
    // Predicated region
    $region18: #{_seq2d_matmul.1} parent=1 // pred_check
      _
    $region19: #{_seq2d_matmul.1} parent=1 // pred_check_branch
      %44 = sbr.rel (0) target = $region21
    $region20: #{_seq2d_matmul.1} parent=1 // pred_region
      %46 = dma.done [#allocation7], 1024
    $region21: #{_seq2d_matmul.1} parent=1 // pred_fallthru
      _
    %p47 = scmp.eq.s32.totalorder 0, 0
    // Predicated region
    $region22: #{_seq2d_matmul.1} parent=1 // pred_check
      %p48 = pneg %p47
    $region23: #{_seq2d_matmul.1} parent=1 // pred_check_branch
      %50 = sbr.rel (%p48) target = $region25
    $region24: #{_seq2d_matmul.1} parent=1 // pred_region
      %v51 = vld [vmem:[%s2] sm:$0x1]
      %v53 = vperm.slane %v51, 0
      %55 = vst [vmem:[#allocation2] sm:$0xff] %v53
      %56 = vst [vmem:[#allocation2 + $0x8] sm:$0xff] %v53
    $region25: #{_seq2d_matmul.1} parent=1 // pred_fallthru
      _
    %v57 = vld [vmem:[#allocation2] sm:$0xff]
    %v58 = vld [vmem:[#allocation2 + $0x8] sm:$0xff]
    %v59 = vld [vmem:[#allocation3] sm:$0xf]
    %v60 = vld [vmem:[#allocation3 + $0x4] sm:$0xf]
    %v61 = vld [vmem:[#allocation6] sm:$0xf]
    %v62 = vld [vmem:[#allocation6 + $0x4] sm:$0xf]
    %v63 = vld [vmem:[#allocation6 + $0x8] sm:$0xf]
    %v64 = vld [vmem:[#allocation6 + $0xc] sm:$0xf]
    %v65 = vld [vmem:[#allocation6 + $0x10] sm:$0xf]
    %v66 = vld [vmem:[#allocation6 + $0x14] sm:$0xf]
    %v67 = vld [vmem:[#allocation6 + $0x18] sm:$0xf]
    %v68 = vld [vmem:[#allocation6 + $0x1c] sm:$0xf]
    %v69 = vld [vmem:[#allocation6 + $0x20] sm:$0xf]
    %v70 = vld [vmem:[#allocation6 + $0x24] sm:$0xf]
    %v71 = vld [vmem:[#allocation6 + $0x28] sm:$0xf]
    %v72 = vld [vmem:[#allocation6 + $0x2c] sm:$0xf]
    %v73 = vld [vmem:[#allocation6 + $0x30] sm:$0xf]
    %v74 = vld [vmem:[#allocation6 + $0x34] sm:$0xf]
    %v75 = vld [vmem:[#allocation6 + $0x38] sm:$0xf]
    %v76 = vld [vmem:[#allocation6 + $0x3c] sm:$0xf]
    %v79 = vunpack.c.l.b16 %v59
    %v80 = vunpack.c.l.b16 %v60
    %v81 = vpack.c.b16 %v80, %v79
    %v99 = vunpack.c.l.b16 %v61
    %v100 = vunpack.c.l.b16 %v62
    %v101 = vunpack.c.l.b16 %v63
    %v102 = vunpack.c.l.b16 %v64
    %v103 = vunpack.c.l.b16 %v65
    %v104 = vunpack.c.l.b16 %v66
    %v105 = vunpack.c.l.b16 %v67
    %v106 = vunpack.c.l.b16 %v68
    %v107 = vunpack.c.l.b16 %v69
    %v108 = vunpack.c.l.b16 %v70
    %v109 = vunpack.c.l.b16 %v71
    %v110 = vunpack.c.l.b16 %v72
    %v111 = vunpack.c.l.b16 %v73
    %v112 = vunpack.c.l.b16 %v74
    %v113 = vunpack.c.l.b16 %v75
    %v114 = vunpack.c.l.b16 %v76
    %v115 = vpack.c.b16 %v100, %v99
    %v116 = vpack.c.b16 %v102, %v101
    %v117 = vpack.c.b16 %v104, %v103
    %v118 = vpack.c.b16 %v106, %v105
    %v119 = vpack.c.b16 %v108, %v107
    %v120 = vpack.c.b16 %v110, %v109
    %v121 = vpack.c.b16 %v112, %v111
    %v122 = vpack.c.b16 %v114, %v113
    %131 = vmatpush.bf16.msra.mxu0 %v122
    %132 = vmatpush.bf16.msra.mxu0 %v121
    %133 = vmatpush.bf16.msra.mxu0 %v120
    %134 = vmatpush.bf16.msra.mxu0 %v119
    %135 = vmatpush.bf16.msra.mxu0 %v118
    %136 = vmatpush.bf16.msra.mxu0 %v117
    %137 = vmatpush.bf16.msra.mxu0 %v116
    %138 = vmatpush.bf16.msra.mxu0 %v115
    %139 = vmatmul.bf16.gmra.mxu0 %v81
    %v140 = vpop.f32.mrf.mxu0
    %v141 = vadd.f32 0.0, %v140
    %v142 = vpop.f32.mrf.mxu0
    %v143 = vadd.f32 0.0, %v142
    %144 = vdwg.mxu0
    %v145 = vadd.f32 %v57, %v141
    %v146 = vadd.f32 %v58, %v143
    %147 = vst [vmem:[#allocation2] sm:$0xff] %v145
    %148 = vst [vmem:[#allocation2 + $0x8] sm:$0xff] %v146
    // Predicated region
    $region26: #{_seq2d_matmul.1} parent=1 // pred_check
      %p149 = pneg %p47
    $region27: #{_seq2d_matmul.1} parent=1 // pred_check_branch
      %151 = sbr.rel (%p149) target = $region29
    $region28: #{_seq2d_matmul.1} parent=1 // pred_region
      %v152 = vld [vmem:[#allocation2] sm:$0xff]
      %v153 = vld [vmem:[#allocation2 + $0x8] sm:$0xff]
      %154 = vst [vmem:[#allocation8] sm:$0xff] %v152
      %155 = vst [vmem:[#allocation8 + $0x8] sm:$0xff] %v153
    $region29: #{_seq2d_matmul.1} parent=1 // pred_fallthru
      _
    // Predicated region
    $region30: #{_seq2d_matmul.1} parent=1 // pred_check
      _
    $region31: #{_seq2d_matmul.1} parent=1 // pred_check_branch
      %157 = sbr.rel (0) target = $region33
    $region32: #{_seq2d_matmul.1} parent=1 // pred_region
      %159 = vsyncadd [#allocation5], 0
      %s160 = sshll.u32 [#allocation8], 4
      %s161 = int_to_ptr.vmem [resolvable:$true] %s160
      %s162 = sshll.u32 %s3, 4
      %s163 = int_to_ptr.hbm [resolvable:$true] %s162
      %168 = dma.vmem_to_hbm [thread:$0]  %s161, 256, %s163, [#allocation5], 128, 128, 8
    $region33: #{_seq2d_matmul.1} parent=1 // pred_fallthru
      _
    // Predicated region
    $region34: #{_seq2d_matmul.1} parent=1 // pred_check
      _
    $region35: #{_seq2d_matmul.1} parent=1 // pred_check_branch
      %170 = sbr.rel (0) target = $region37
    $region36: #{_seq2d_matmul.1} parent=1 // pred_region
      %172 = dma.done [#allocation5], 256
    $region37: #{_seq2d_matmul.1} parent=1 // pred_fallthru
      _
    %173 = vsyncpa [#allocation4], 1
    %174 = vsyncpa [#allocation7], 1
    %175 = vsyncpa [#allocation5], 1

</llo_original>
